<compile_context>
chip_gen: v5e
topology: v5e:2x2
jax: 0.10.0
libtpu: 0.0.40
codegen_flags: <defaults>
</compile_context>

<pallas_src>
import functools

import jax
import jax.numpy as jnp
from jax.experimental import pallas as pl
from jax.experimental.pallas import tpu as pltpu

D_IN, D_H1, D_H2, D_OUT = 512, 256, 128, 10
D_OUT_PAD = 128  # lane-dense padded output width

_BLOCK_M_BUCKETS = (2048, 1024, 512, 256, 128, 64, 32, 16, 8)


def _pick_block_m(n, desired=1024):
    """Bucketed batch tile: biggest bucket <= desired that still leaves >= 2
    grid steps (so v7x megacore sharding has work for both TensorCores)."""
    for bm in _BLOCK_M_BUCKETS:
        if bm <= desired and pl.cdiv(n, bm) >= 2:
            return bm
    return 8


def _mlp_kernel(h_ref, w1_ref, b1_ref, w2_ref, b2_ref, w3_ref, b3_ref, o_ref):
    # One batch tile of the whole 3-layer MLP, fused in VMEM.
    x = h_ref[...].astype(jnp.bfloat16)                                  # (tm, 512)

    a1 = jnp.dot(x, w1_ref[...], preferred_element_type=jnp.float32)    # (tm, 256)
    a1 = jnp.maximum(a1 + b1_ref[...], 0.0).astype(jnp.bfloat16)        # ReLU (f32) -> bf16

    a2 = jnp.dot(a1, w2_ref[...], preferred_element_type=jnp.float32)   # (tm, 128)
    a2 = jnp.maximum(a2 + b2_ref[...], 0.0).astype(jnp.bfloat16)        # ReLU (f32) -> bf16

    out = jnp.dot(a2, w3_ref[...], preferred_element_type=jnp.float32)  # (tm, 128 padded)
    o_ref[...] = (out + b3_ref[...]).astype(o_ref.dtype)                # lane-dense store


@functools.partial(jax.jit, static_argnames=("block_m", "out_dtype"))
def _forward(h, w1, b1, w2, b2, w3, b3, *, block_m, out_dtype=jnp.bfloat16):
    n = h.shape[0]

    # bf16 operands for the MXU; biases stay f32 (epilogue runs in f32).
    # Layer 3 is zero-padded 10 -> 128 output columns for a lane-dense store.
    w1b = w1.astype(jnp.bfloat16)
    w2b = w2.astype(jnp.bfloat16)
    w3p = jnp.zeros((D_H2, D_OUT_PAD), jnp.bfloat16).at[:, :D_OUT].set(
        w3.astype(jnp.bfloat16))
    b1f = b1.astype(jnp.float32)
    b2f = b2.astype(jnp.float32)
    b3p = jnp.zeros((1, D_OUT_PAD), jnp.float32).at[:, :D_OUT].set(
        b3.astype(jnp.float32))

    grid = (pl.cdiv(n, block_m),)     # ragged tail block is masked by Pallas
    full = lambda i: (0, 0)           # resident weights/biases: same block every step

    out_itemsize = jnp.dtype(out_dtype).itemsize
    weight_bytes = (2 * (D_IN * D_H1 + D_H1 * D_H2 + D_H2 * D_OUT_PAD)
                    + 4 * (D_H1 + D_H2 + D_OUT_PAD))
    flops = 2 * n * (D_IN * D_H1 + D_H1 * D_H2 + D_H2 * D_OUT_PAD)
    bytes_accessed = (n * D_IN * h.dtype.itemsize      # activations in
                      + weight_bytes                   # resident weights/biases
                      + n * D_OUT_PAD * out_itemsize)  # padded output writeback

    # Scoped-VMEM estimate: double-buffered h tile + out tile + weights + slack.
    # Only override the default limit when the tile is big enough to need it
    # (v5e default scoped limit is 16 MiB; v6e/v7x are 32 MiB).
    vmem_bytes = (2 * block_m * D_IN * h.dtype.itemsize
                  + 2 * block_m * D_OUT_PAD * out_itemsize
                  + weight_bytes + (2 << 20))
    vmem_limit = None if vmem_bytes <= (16 << 20) else vmem_bytes

    out = pl.pallas_call(
        _mlp_kernel,
        out_shape=jax.ShapeDtypeStruct((n, D_OUT_PAD), out_dtype),
        grid_spec=pltpu.PrefetchScalarGridSpec(
            num_scalar_prefetch=0,
            grid=grid,
            in_specs=[
                pl.BlockSpec((block_m, D_IN), lambda i: (i, 0)),   # h tile (streamed)
                pl.BlockSpec((D_IN, D_H1), full),                  # w1 (resident)
                pl.BlockSpec((1, D_H1), full),                     # b1
                pl.BlockSpec((D_H1, D_H2), full),                  # w2
                pl.BlockSpec((1, D_H2), full),                     # b2
                pl.BlockSpec((D_H2, D_OUT_PAD), full),             # w3 (padded)
                pl.BlockSpec((1, D_OUT_PAD), full),                # b3 (padded)
            ],
            out_specs=pl.BlockSpec((block_m, D_OUT_PAD), lambda i: (i, 0)),
        ),
        compiler_params=pltpu.CompilerParams(
            dimension_semantics=("parallel",),
            vmem_limit_bytes=vmem_limit,
        ),
        cost_estimate=pl.CostEstimate(
            flops=flops, transcendentals=0, bytes_accessed=bytes_accessed),
    )(h, w1b, b1f, w2b, b2f, w3p, b3p)

    # Tiny slice+cast on the narrow bf16 buffer (10 useful logits per row).
    return out[:, :D_OUT].astype(jnp.float32)


def label_predictor(h, params, *, block_m=None, out_dtype=jnp.bfloat16):
    """h: (N, 512) f32 or bf16 -> (N, 10) f32 logits (bf16 matmul operands)."""
    w1, b1, w2, b2, w3, b3 = params
    desired = 1024 if block_m is None else block_m
    bm = _pick_block_m(h.shape[0], desired=desired)
    return _forward(h, w1, b1, w2, b2, w3, b3, block_m=bm, out_dtype=out_dtype)


def init_params(key):
    """Deterministic init mimicking nn.Linear (uniform +- 1/sqrt(fan_in))."""
    def linear(key, fan_in, fan_out):
        kw, kb = jax.random.split(key)
        bound = 1.0 / jnp.sqrt(fan_in)
        # Stored as (in, out) so the kernel can do h @ W directly.
        w = jax.random.uniform(kw, (fan_in, fan_out), jnp.float32, -bound, bound)
        b = jax.random.uniform(kb, (1, fan_out), jnp.float32, -bound, bound)
        return w, b

    k1, k2, k3 = jax.random.split(key, 3)
    w1, b1 = linear(k1, D_IN, D_H1)
    w2, b2 = linear(k2, D_H1, D_H2)
    w3, b3 = linear(k3, D_H2, D_OUT)
    return (w1, b1, w2, b2, w3, b3)


def _reference_f32(h, params):
    w1, b1, w2, b2, w3, b3 = params
    hf = h.astype(jnp.float32)
    a1 = jnp.maximum(hf @ w1 + b1, 0.0)
    a2 = jnp.maximum(a1 @ w2 + b2, 0.0)
    return a2 @ w3 + b3


def _reference_bf16(h, params):
    # Same operand precision as the kernel: bf16 matmul operands, f32
    # accumulation, bf16 writeback of the logits.
    w1, b1, w2, b2, w3, b3 = params
    bf = jnp.bfloat16
    a1 = jnp.maximum(
        jnp.dot(h.astype(bf), w1.astype(bf), preferred_element_type=jnp.float32) + b1, 0.0)
    a2 = jnp.maximum(
        jnp.dot(a1.astype(bf), w2.astype(bf), preferred_element_type=jnp.float32) + b2, 0.0)
    out = jnp.dot(a2.astype(bf), w3.astype(bf), preferred_element_type=jnp.float32) + b3
    return out.astype(bf).astype(jnp.float32)


if __name__ == "__main__":
    key = jax.random.PRNGKey(0)
    k_param, k_input = jax.random.split(key)

    params = init_params(k_param)
    h = jax.random.normal(k_input, (16, D_IN), jnp.float32)  # small batch

    out = jax.block_until_ready(label_predictor(h, params))
    assert out.shape == (16, D_OUT)
    assert jnp.allclose(out, _reference_bf16(h, params), atol=2e-2, rtol=2e-2), \
        "mismatch vs bf16-operand JAX reference"
    assert jnp.allclose(out, _reference_f32(h, params), atol=1e-1, rtol=1e-1), \
        "mismatch vs f32 JAX reference"

    # Ragged batch exercises the masked tail block (no wrapper-side padding).
    h2 = jax.random.normal(jax.random.PRNGKey(1), (10, D_IN), jnp.float32)
    out2 = jax.block_until_ready(label_predictor(h2, params))
    assert out2.shape == (10, D_OUT)
    assert jnp.allclose(out2, _reference_bf16(h2, params), atol=2e-2, rtol=2e-2), \
        "ragged-batch mismatch vs bf16-operand JAX reference"

    # bf16 activations straight from a (hypothetical) bf16 producer — no
    # wrapper-side cast pass; kernel consumes them directly.
    h3 = jax.random.normal(jax.random.PRNGKey(2), (24, D_IN), jnp.bfloat16)
    out3 = jax.block_until_ready(label_predictor(h3, params))
    assert out3.shape == (24, D_OUT)
    assert jnp.allclose(out3, _reference_bf16(h3, params), atol=2e-2, rtol=2e-2), \
        "bf16-input mismatch vs bf16-operand JAX reference"

    print("KERNEL_OK")
</pallas_src>

<mosaic_0001>
module attributes {stable_mosaic.version = 11 : i64} {
  func.func @_mlp_kernel(%arg0: i32, %arg1: memref<8x512xf32, #tpu.memory_space<vmem>>, %arg2: memref<512x256xbf16, #tpu.memory_space<vmem>>, %arg3: memref<1x256xf32, #tpu.memory_space<vmem>>, %arg4: memref<256x128xbf16, #tpu.memory_space<vmem>>, %arg5: memref<1x128xf32, #tpu.memory_space<vmem>>, %arg6: memref<128x128xbf16, #tpu.memory_space<vmem>>, %arg7: memref<1x128xf32, #tpu.memory_space<vmem>>, %arg8: memref<8x128xbf16, #tpu.memory_space<vmem>>) attributes {dimension_semantics = [#tpu.dimension_semantics<parallel>], iteration_bounds = array<i64: 2>, scalar_prefetch = 0 : i64, scratch_operands = 0 : i64, tpu.core_type = #tpu.core_type<tc>, window_params = [{transform_indices = @transform_0, window_bounds = array<i64: 8, 512>}, {pipeline_mode = #tpu.pipeline_mode<synchronous>, transform_indices = @transform_1, window_bounds = array<i64: 512, 256>}, {pipeline_mode = #tpu.pipeline_mode<synchronous>, transform_indices = @transform_2, window_bounds = array<i64: 1, 256>}, {pipeline_mode = #tpu.pipeline_mode<synchronous>, transform_indices = @transform_3, window_bounds = array<i64: 256, 128>}, {pipeline_mode = #tpu.pipeline_mode<synchronous>, transform_indices = @transform_4, window_bounds = array<i64: 1, 128>}, {pipeline_mode = #tpu.pipeline_mode<synchronous>, transform_indices = @transform_5, window_bounds = array<i64: 128, 128>}, {pipeline_mode = #tpu.pipeline_mode<synchronous>, transform_indices = @transform_6, window_bounds = array<i64: 1, 128>}, {transform_indices = @transform_7, window_bounds = array<i64: 8, 128>}]} {
    %c0 = arith.constant 0 : index
    %c0_0 = arith.constant 0 : index
    %0 = vector.load %arg1[%c0, %c0_0] : memref<8x512xf32, #tpu.memory_space<vmem>>, vector<8x512xf32>
    %1 = arith.truncf %0 : vector<8x512xf32> to vector<8x512xbf16>
    %c0_1 = arith.constant 0 : index
    %c0_2 = arith.constant 0 : index
    %2 = vector.load %arg2[%c0_1, %c0_2] : memref<512x256xbf16, #tpu.memory_space<vmem>>, vector<512x256xbf16>
    %cst = arith.constant dense<0.000000e+00> : vector<8x256xf32>
    %3 = tpu.matmul %1, %2, %cst {dimension_numbers = #tpu.dot_dimension_numbers<[1], [0], [0], [1], [0, 0, 1, 1], [], []>} : vector<8x512xbf16>, vector<512x256xbf16>, vector<8x256xf32> -> vector<8x256xf32>
    %c0_3 = arith.constant 0 : index
    %c0_4 = arith.constant 0 : index
    %4 = vector.load %arg3[%c0_3, %c0_4] : memref<1x256xf32, #tpu.memory_space<vmem>>, vector<1x256xf32>
    %5 = vector.broadcast %4 : vector<1x256xf32> to vector<8x256xf32>
    %6 = arith.addf %3, %5 : vector<8x256xf32>
    %cst_5 = arith.constant 0.000000e+00 : f32
    %7 = vector.broadcast %cst_5 : f32 to vector<8x256xf32>
    %8 = arith.maximumf %6, %7 : vector<8x256xf32>
    %9 = arith.truncf %8 : vector<8x256xf32> to vector<8x256xbf16>
    %c0_6 = arith.constant 0 : index
    %c0_7 = arith.constant 0 : index
    %10 = vector.load %arg4[%c0_6, %c0_7] : memref<256x128xbf16, #tpu.memory_space<vmem>>, vector<256x128xbf16>
    %cst_8 = arith.constant dense<0.000000e+00> : vector<8x128xf32>
    %11 = tpu.matmul %9, %10, %cst_8 {dimension_numbers = #tpu.dot_dimension_numbers<[1], [0], [0], [1], [0, 0, 1, 1], [], []>} : vector<8x256xbf16>, vector<256x128xbf16>, vector<8x128xf32> -> vector<8x128xf32>
    %c0_9 = arith.constant 0 : index
    %c0_10 = arith.constant 0 : index
    %12 = vector.load %arg5[%c0_9, %c0_10] : memref<1x128xf32, #tpu.memory_space<vmem>>, vector<1x128xf32>
    %13 = vector.broadcast %12 : vector<1x128xf32> to vector<8x128xf32>
    %14 = arith.addf %11, %13 : vector<8x128xf32>
    %cst_11 = arith.constant 0.000000e+00 : f32
    %15 = vector.broadcast %cst_11 : f32 to vector<8x128xf32>
    %16 = arith.maximumf %14, %15 : vector<8x128xf32>
    %17 = arith.truncf %16 : vector<8x128xf32> to vector<8x128xbf16>
    %c0_12 = arith.constant 0 : index
    %c0_13 = arith.constant 0 : index
    %18 = vector.load %arg6[%c0_12, %c0_13] : memref<128x128xbf16, #tpu.memory_space<vmem>>, vector<128x128xbf16>
    %cst_14 = arith.constant dense<0.000000e+00> : vector<8x128xf32>
    %19 = tpu.matmul %17, %18, %cst_14 {dimension_numbers = #tpu.dot_dimension_numbers<[1], [0], [0], [1], [0, 0, 1, 1], [], []>} : vector<8x128xbf16>, vector<128x128xbf16>, vector<8x128xf32> -> vector<8x128xf32>
    %c0_15 = arith.constant 0 : index
    %c0_16 = arith.constant 0 : index
    %20 = vector.load %arg7[%c0_15, %c0_16] : memref<1x128xf32, #tpu.memory_space<vmem>>, vector<1x128xf32>
    %21 = vector.broadcast %20 : vector<1x128xf32> to vector<8x128xf32>
    %22 = arith.addf %19, %21 : vector<8x128xf32>
    %23 = arith.truncf %22 : vector<8x128xf32> to vector<8x128xbf16>
    %c0_17 = arith.constant 0 : index
    %c0_18 = arith.constant 0 : index
    %24 = vector.load %arg8[%c0_17, %c0_18] : memref<8x128xbf16, #tpu.memory_space<vmem>>, vector<8x128xbf16>
    tpu.vector_store %arg8[%c0_17, %c0_18], %23 {strides = array<i32>} : memref<8x128xbf16, #tpu.memory_space<vmem>>, vector<8x128xbf16>,
    return
  }
  func.func @transform_0(%arg0: i32) -> (i32, i32) {
    %c0_i32 = arith.constant 0 : i32
    %c0_i32_0 = arith.constant 0 : i32
    return %arg0, %c0_i32 : i32, i32
  }
  func.func @transform_1(%arg0: i32) -> (i32, i32) {
    %c0_i32 = arith.constant 0 : i32
    %c0_i32_0 = arith.constant 0 : i32
    %c0_i32_1 = arith.constant 0 : i32
    return %c0_i32, %c0_i32_0 : i32, i32
  }
  func.func @transform_2(%arg0: i32) -> (i32, i32) {
    %c0_i32 = arith.constant 0 : i32
    %c0_i32_0 = arith.constant 0 : i32
    %c0_i32_1 = arith.constant 0 : i32
    return %c0_i32, %c0_i32_0 : i32, i32
  }
  func.func @transform_3(%arg0: i32) -> (i32, i32) {
    %c0_i32 = arith.constant 0 : i32
    %c0_i32_0 = arith.constant 0 : i32
    %c0_i32_1 = arith.constant 0 : i32
    return %c0_i32, %c0_i32_0 : i32, i32
  }
  func.func @transform_4(%arg0: i32) -> (i32, i32) {
    %c0_i32 = arith.constant 0 : i32
    %c0_i32_0 = arith.constant 0 : i32
    %c0_i32_1 = arith.constant 0 : i32
    return %c0_i32, %c0_i32_0 : i32, i32
  }
  func.func @transform_5(%arg0: i32) -> (i32, i32) {
    %c0_i32 = arith.constant 0 : i32
    %c0_i32_0 = arith.constant 0 : i32
    %c0_i32_1 = arith.constant 0 : i32
    return %c0_i32, %c0_i32_0 : i32, i32
  }
  func.func @transform_6(%arg0: i32) -> (i32, i32) {
    %c0_i32 = arith.constant 0 : i32
    %c0_i32_0 = arith.constant 0 : i32
    %c0_i32_1 = arith.constant 0 : i32
    return %c0_i32, %c0_i32_0 : i32, i32
  }
  func.func @transform_7(%arg0: i32) -> (i32, i32) {
    %c0_i32 = arith.constant 0 : i32
    %c0_i32_0 = arith.constant 0 : i32
    return %arg0, %c0_i32 : i32, i32
  }
}

</mosaic_0001>

<llo_original>
// kernel: _forward.1
$region0: #{_forward.1}
  #allocation0 [shape = 'u32[]', space=smem, size = 0x4, offset = 0x4, fixed_abs, tag = 'smem constant byte address 0x4 - core index']
  #allocation1 [shape = 'u32[72,128]{1,0:T(1,128)}', space=vmem, size = 0x9000, scoped, tag = 'internal scratch']
  %s0 = inlined_call_operand.vmem [shape: f32[16,512], index: 0, kind: input, shape index: {}]
  %s1 = inlined_call_operand.vmem [shape: bf16[512,256], index: 1, kind: input, shape index: {}]
  %s2 = inlined_call_operand.vmem [shape: f32[1,256], index: 2, kind: input, shape index: {}]
  %s3 = inlined_call_operand.vmem [shape: bf16[256,128], index: 3, kind: input, shape index: {}]
  %s4 = inlined_call_operand.vmem [shape: f32[1,128], index: 4, kind: input, shape index: {}]
  %s5 = inlined_call_operand.vmem [shape: bf16[128,128], index: 5, kind: input, shape index: {}]
  %s6 = inlined_call_operand.vmem [shape: f32[1,128], index: 6, kind: input, shape index: {}]
  %s7 = inlined_call_operand.vmem [shape: bf16[16,128], index: 7, kind: output, shape index: {}]
  %s8 = sld [smem:[#allocation0]]
  $region61: #{_forward.1} parent=0
    _
  %s10 = ssub.s32 1, %s8
  %s11 = scalar_select 0, %s10, %s8
  loop: start=0, step=1, limit=4
  $region2: #{_forward.1} parent=0 // loop_pre_header
    _
  $region3: #{_forward.1} parent=0 // loop_header
    %s13 = sphi 0, %s17
    %p14 = scmp.ge.s32.totalorder %s13, 4
    %s23 = sphi 0, %s25
    %s26 = sphi 0, %s23
    %s27 = sphi 0, %s26
    %s43 = sphi 0, %s27
    %s47 = sphi 0, %s47
    %s49 = sphi 0, %s47
    %s50 = sphi 0, %s49
    %s64 = sphi 0, %s50
    %s68 = sphi 0, %s68
    %s70 = sphi 0, %s68
    %s71 = sphi 0, %s70
    %s85 = sphi 0, %s71
    %s89 = sphi 0, %s89
    %s91 = sphi 0, %s89
    %s92 = sphi 0, %s91
    %s106 = sphi 0, %s92
    %s110 = sphi 0, %s110
    %s112 = sphi 0, %s110
    %s113 = sphi 0, %s112
    %s127 = sphi 0, %s113
    %s131 = sphi 0, %s131
    %s133 = sphi 0, %s131
    %s134 = sphi 0, %s133
    %s148 = sphi 0, %s134
    %s152 = sphi 0, %s152
    %s154 = sphi 0, %s152
    %s155 = sphi 0, %s154
    %s169 = sphi 0, %s155
    %s175 = sphi 0, %s177
    %s178 = sphi 0, %s175
    %s179 = sphi 0, %s178
    %s195 = sphi 0, %s179
  $region4: #{_forward.1} parent=0 // loop_header_branch
    %16 = sbr.rel (%p14) target = $region8
  $region5: #{_forward.1} parent=0 // loop_body
    %s18 = ssub.s32 %s13, 1
    %s19 = ssub.s32 %s13, 2
    %s20 = sadd.s32 %s13, 1
    %s21 = ssub.s32 %s13, %s20
    %p22 = scmp.eq.s32.totalorder %s21, 0
    %s24 = sadd.s32 %s23, 1
    %s25 = scalar_select %p22, %s23, %s24
    %p28 = pneg %p22
    %p29 = scmp.eq.s32.totalorder %s13, 1
    %p30 = por %p28, %p29
    %p31 = scmp.ne.s32.totalorder %s23, %s26
    %p32 = scmp.eq.s32.totalorder %s13, 0
    %p33 = por %p31, %p32
    %p34 = scmp.ne.s32.totalorder %s23, %s26
    %p35 = scmp.eq.s32.totalorder %s18, 1
    %p36 = por %p34, %p35
    %p37 = scmp.ne.s32.totalorder %s26, %s27
    %p38 = scmp.eq.s32.totalorder %s18, 0
    %p39 = por %p37, %p38
    %p40 = scmp.ne.s32.totalorder %s26, %s27
    %p41 = scmp.eq.s32.totalorder %s19, 1
    %p42 = por %p40, %p41
    %p44 = scmp.ne.s32.totalorder %s27, %s43
    %p45 = scmp.eq.s32.totalorder %s19, 0
    %p46 = por %p44, %p45
    %s48 = sadd.s32 %s47, 1
    %p51 = scmp.eq.s32.totalorder %s13, 1
    %p52 = scmp.ne.s32.totalorder %s47, %s49
    %p53 = scmp.eq.s32.totalorder %s13, 0
    %p54 = por %p52, %p53
    %p55 = scmp.ne.s32.totalorder %s47, %s49
    %p56 = scmp.eq.s32.totalorder %s18, 1
    %p57 = por %p55, %p56
    %p58 = scmp.ne.s32.totalorder %s49, %s50
    %p59 = scmp.eq.s32.totalorder %s18, 0
    %p60 = por %p58, %p59
    %p61 = scmp.ne.s32.totalorder %s49, %s50
    %p62 = scmp.eq.s32.totalorder %s19, 1
    %p63 = por %p61, %p62
    %p65 = scmp.ne.s32.totalorder %s50, %s64
    %p66 = scmp.eq.s32.totalorder %s19, 0
    %p67 = por %p65, %p66
    %s69 = sadd.s32 %s68, 1
    %p72 = scmp.eq.s32.totalorder %s13, 1
    %p73 = scmp.ne.s32.totalorder %s68, %s70
    %p74 = scmp.eq.s32.totalorder %s13, 0
    %p75 = por %p73, %p74
    %p76 = scmp.ne.s32.totalorder %s68, %s70
    %p77 = scmp.eq.s32.totalorder %s18, 1
    %p78 = por %p76, %p77
    %p79 = scmp.ne.s32.totalorder %s70, %s71
    %p80 = scmp.eq.s32.totalorder %s18, 0
    %p81 = por %p79, %p80
    %p82 = scmp.ne.s32.totalorder %s70, %s71
    %p83 = scmp.eq.s32.totalorder %s19, 1
    %p84 = por %p82, %p83
    %p86 = scmp.ne.s32.totalorder %s71, %s85
    %p87 = scmp.eq.s32.totalorder %s19, 0
    %p88 = por %p86, %p87
    %s90 = sadd.s32 %s89, 1
    %p93 = scmp.eq.s32.totalorder %s13, 1
    %p94 = scmp.ne.s32.totalorder %s89, %s91
    %p95 = scmp.eq.s32.totalorder %s13, 0
    %p96 = por %p94, %p95
    %p97 = scmp.ne.s32.totalorder %s89, %s91
    %p98 = scmp.eq.s32.totalorder %s18, 1
    %p99 = por %p97, %p98
    %p100 = scmp.ne.s32.totalorder %s91, %s92
    %p101 = scmp.eq.s32.totalorder %s18, 0
    %p102 = por %p100, %p101
    %p103 = scmp.ne.s32.totalorder %s91, %s92
    %p104 = scmp.eq.s32.totalorder %s19, 1
    %p105 = por %p103, %p104
    %p107 = scmp.ne.s32.totalorder %s92, %s106
    %p108 = scmp.eq.s32.totalorder %s19, 0
    %p109 = por %p107, %p108
    %s111 = sadd.s32 %s110, 1
    %p114 = scmp.eq.s32.totalorder %s13, 1
    %p115 = scmp.ne.s32.totalorder %s110, %s112
    %p116 = scmp.eq.s32.totalorder %s13, 0
    %p117 = por %p115, %p116
    %p118 = scmp.ne.s32.totalorder %s110, %s112
    %p119 = scmp.eq.s32.totalorder %s18, 1
    %p120 = por %p118, %p119
    %p121 = scmp.ne.s32.totalorder %s112, %s113
    %p122 = scmp.eq.s32.totalorder %s18, 0
    %p123 = por %p121, %p122
    %p124 = scmp.ne.s32.totalorder %s112, %s113
    %p125 = scmp.eq.s32.totalorder %s19, 1
    %p126 = por %p124, %p125
    %p128 = scmp.ne.s32.totalorder %s113, %s127
    %p129 = scmp.eq.s32.totalorder %s19, 0
    %p130 = por %p128, %p129
    %s132 = sadd.s32 %s131, 1
    %p135 = scmp.eq.s32.totalorder %s13, 1
    %p136 = scmp.ne.s32.totalorder %s131, %s133
    %p137 = scmp.eq.s32.totalorder %s13, 0
    %p138 = por %p136, %p137
    %p139 = scmp.ne.s32.totalorder %s131, %s133
    %p140 = scmp.eq.s32.totalorder %s18, 1
    %p141 = por %p139, %p140
    %p142 = scmp.ne.s32.totalorder %s133, %s134
    %p143 = scmp.eq.s32.totalorder %s18, 0
    %p144 = por %p142, %p143
    %p145 = scmp.ne.s32.totalorder %s133, %s134
    %p146 = scmp.eq.s32.totalorder %s19, 1
    %p147 = por %p145, %p146
    %p149 = scmp.ne.s32.totalorder %s134, %s148
    %p150 = scmp.eq.s32.totalorder %s19, 0
    %p151 = por %p149, %p150
    %s153 = sadd.s32 %s152, 1
    %p156 = scmp.eq.s32.totalorder %s13, 1
    %p157 = scmp.ne.s32.totalorder %s152, %s154
    %p158 = scmp.eq.s32.totalorder %s13, 0
    %p159 = por %p157, %p158
    %p160 = scmp.ne.s32.totalorder %s152, %s154
    %p161 = scmp.eq.s32.totalorder %s18, 1
    %p162 = por %p160, %p161
    %p163 = scmp.ne.s32.totalorder %s154, %s155
    %p164 = scmp.eq.s32.totalorder %s18, 0
    %p165 = por %p163, %p164
    %p166 = scmp.ne.s32.totalorder %s154, %s155
    %p167 = scmp.eq.s32.totalorder %s19, 1
    %p168 = por %p166, %p167
    %p170 = scmp.ne.s32.totalorder %s155, %s169
    %p171 = scmp.eq.s32.totalorder %s19, 0
    %p172 = por %p170, %p171
    %s173 = ssub.s32 %s13, %s20
    %p174 = scmp.eq.s32.totalorder %s173, 0
    %s176 = sadd.s32 %s175, 1
    %s177 = scalar_select %p174, %s175, %s176
    %p180 = pneg %p174
    %p181 = scmp.eq.s32.totalorder %s13, 1
    %p182 = por %p180, %p181
    %p183 = scmp.ne.s32.totalorder %s175, %s178
    %p184 = scmp.eq.s32.totalorder %s13, 0
    %p185 = por %p183, %p184
    %p186 = scmp.ne.s32.totalorder %s175, %s178
    %p187 = scmp.eq.s32.totalorder %s18, 1
    %p188 = por %p186, %p187
    %p189 = scmp.ne.s32.totalorder %s178, %s179
    %p190 = scmp.eq.s32.totalorder %s18, 0
    %p191 = por %p189, %p190
    %p192 = scmp.ne.s32.totalorder %s178, %s179
    %p193 = scmp.eq.s32.totalorder %s19, 1
    %p194 = por %p192, %p193
    %p196 = scmp.ne.s32.totalorder %s179, %s195
    %p197 = scmp.eq.s32.totalorder %s19, 0
    %p198 = por %p196, %p197
    %p199 = scmp.le.s32.totalorder 1, %s13
    %p200 = scmp.lt.s32.totalorder %s13, 3
    %p201 = pnand %p199, %p200
    %p202 = pneg %p201
    // Predicated region
    $region9: #{_forward.1} parent=5 // pred_check
      _
    $region10: #{_forward.1} parent=5 // pred_check_branch
      %204 = sbr.rel (%p201) target = $region12
    $region11: #{_forward.1} parent=5 // pred_region
      %s205 = ssub.s32 %s13, 1
      // Predicated region
      $region13: #{_forward.1} parent=11 // pred_check
        %p206 = pneg %p60
      $region14: #{_forward.1} parent=11 // pred_check_branch
        %208 = sbr.rel (%p206) target = $region16
      $region15: #{_forward.1} parent=11 // pred_region
        _
      $region16: #{_forward.1} parent=11 // pred_fallthru
        _
      // Predicated region
      $region17: #{_forward.1} parent=11 // pred_check
        %p209 = pneg %p81
      $region18: #{_forward.1} parent=11 // pred_check_branch
        %211 = sbr.rel (%p209) target = $region20
      $region19: #{_forward.1} parent=11 // pred_region
        _
      $region20: #{_forward.1} parent=11 // pred_fallthru
        _
      // Predicated region
      $region21: #{_forward.1} parent=11 // pred_check
        %p212 = pneg %p102
      $region22: #{_forward.1} parent=11 // pred_check_branch
        %214 = sbr.rel (%p212) target = $region24
      $region23: #{_forward.1} parent=11 // pred_region
        _
      $region24: #{_forward.1} parent=11 // pred_fallthru
        _
      // Predicated region
      $region25: #{_forward.1} parent=11 // pred_check
        %p215 = pneg %p123
      $region26: #{_forward.1} parent=11 // pred_check_branch
        %217 = sbr.rel (%p215) target = $region28
      $region27: #{_forward.1} parent=11 // pred_region
        _
      $region28: #{_forward.1} parent=11 // pred_fallthru
        _
      // Predicated region
      $region29: #{_forward.1} parent=11 // pred_check
        %p218 = pneg %p144
      $region30: #{_forward.1} parent=11 // pred_check_branch
        %220 = sbr.rel (%p218) target = $region32
      $region31: #{_forward.1} parent=11 // pred_region
        _
      $region32: #{_forward.1} parent=11 // pred_fallthru
        _
      // Predicated region
      $region33: #{_forward.1} parent=11 // pred_check
        %p221 = pneg %p165
      $region34: #{_forward.1} parent=11 // pred_check_branch
        %223 = sbr.rel (%p221) target = $region36
      $region35: #{_forward.1} parent=11 // pred_region
        _
      $region36: #{_forward.1} parent=11 // pred_fallthru
        _
    $region12: #{_forward.1} parent=5 // pred_fallthru
      _
    %p224 = scmp.lt.s32.totalorder %s13, 2
    // Predicated region
    $region37: #{_forward.1} parent=5 // pred_check
      %p225 = pneg %p224
    $region38: #{_forward.1} parent=5 // pred_check_branch
      %227 = sbr.rel (%p225) target = $region40
    $region39: #{_forward.1} parent=5 // pred_region
      // Predicated region
      $region41: #{_forward.1} parent=39 // pred_check
        %p228 = pneg %p33
      $region42: #{_forward.1} parent=39 // pred_check_branch
        %230 = sbr.rel (%p228) target = $region44
      $region43: #{_forward.1} parent=39 // pred_region
        %p231 = scmp.lt.s32.totalorder %s13, 1
        %s232 = scalar_select %p231, %s13, 1
        %s233 = smul.addr %s232, 4
        %s234 = smul.addr %s233, 8
        %s235 = scalar_lea.vmem %s0, %s234
      $region44: #{_forward.1} parent=39 // pred_fallthru
        _
    $region40: #{_forward.1} parent=5 // pred_fallthru
      _
    %p236 = scmp.le.s32.totalorder 1, %s13
    %p237 = scmp.lt.s32.totalorder %s13, 3
    %p238 = pnand %p236, %p237
    %p239 = pneg %p238
    // Predicated region
    $region45: #{_forward.1} parent=5 // pred_check
      _
    $region46: #{_forward.1} parent=5 // pred_check_branch
      %241 = sbr.rel (%p238) target = $region48
    $region47: #{_forward.1} parent=5 // pred_region
      %s242 = ssub.s32 %s13, 1
      %p243 = scmp.lt.s32.totalorder %s18, 1
      %s244 = scalar_select %p243, %s18, 1
      %s245 = smul.addr %s244, 4
      %s246 = smul.addr %s245, 8
      %s247 = scalar_lea.vmem %s0, %s246
      %p248 = pneg %p39
      %p249 = pneg %p36
      %p250 = pneg %p60
      %p251 = pneg %p57
      %p252 = pneg %p81
      %p253 = pneg %p78
      %p254 = pneg %p102
      %p255 = pneg %p99
      %p256 = pneg %p123
      %p257 = pneg %p120
      %p258 = pneg %p144
      %p259 = pneg %p141
      %p260 = pneg %p165
      %p261 = pneg %p162
      %p262 = pneg %p191
      %p263 = pneg %p188
      %p264 = scmp.lt.s32.totalorder %s18, 1
      %s265 = scalar_select %p264, %s18, 1
      %s266 = smul.addr %s265, 4
      %s267 = scalar_lea.vmem %s7, %s266
      %p268 = scmp.lt.s32.totalorder %s18, 1
      %s269 = scalar_select %p268, %s18, 1
      %s270 = smul.addr %s269, 4
      %s271 = smul.addr %s270, 8
      %s272 = scalar_lea.vmem %s0, %s271
      %p273 = scmp.lt.s32.totalorder %s18, 1
      %s274 = scalar_select %p273, %s18, 1
      %s275 = smul.addr %s274, 4
      %s276 = scalar_lea.vmem %s7, %s275
      %v277 = vld [vmem:[%s272] sm:$0xff]
      %v278 = vld [vmem:[%s272 + $0x8] sm:$0xff]
      %v279 = vld [vmem:[%s272 + $0x10] sm:$0xff]
      %v280 = vld [vmem:[%s272 + $0x18] sm:$0xff]
      %v281 = vpack.c.bf16 %v277, %v277
      %v282 = vpack.c.bf16 %v278, %v278
      %v283 = vpack.c.bf16 %v279, %v279
      %v284 = vpack.c.bf16 %v280, %v280
      %v285 = vld [vmem:[%s1] sm:$0xff]
      %v286 = vld [vmem:[%s1 + $0x8] sm:$0xff]
      %v287 = vld [vmem:[%s1 + $0x10] sm:$0xff]
      %v288 = vld [vmem:[%s1 + $0x18] sm:$0xff]
      %v289 = vld [vmem:[%s1 + $0x20] sm:$0xff]
      %v290 = vld [vmem:[%s1 + $0x28] sm:$0xff]
      %v291 = vld [vmem:[%s1 + $0x30] sm:$0xff]
      %v292 = vld [vmem:[%s1 + $0x38] sm:$0xff]
      %v293 = vld [vmem:[%s1 + $0x40] sm:$0xff]
      %v294 = vld [vmem:[%s1 + $0x48] sm:$0xff]
      %v295 = vld [vmem:[%s1 + $0x50] sm:$0xff]
      %v296 = vld [vmem:[%s1 + $0x58] sm:$0xff]
      %v297 = vld [vmem:[%s1 + $0x60] sm:$0xff]
      %v298 = vld [vmem:[%s1 + $0x68] sm:$0xff]
      %v299 = vld [vmem:[%s1 + $0x70] sm:$0xff]
      %v300 = vld [vmem:[%s1 + $0x78] sm:$0xff]
      %v301 = vld [vmem:[%s1 + $0x80] sm:$0xff]
      %v302 = vld [vmem:[%s1 + $0x88] sm:$0xff]
      %v303 = vld [vmem:[%s1 + $0x90] sm:$0xff]
      %v304 = vld [vmem:[%s1 + $0x98] sm:$0xff]
      %v305 = vld [vmem:[%s1 + $0xa0] sm:$0xff]
      %v306 = vld [vmem:[%s1 + $0xa8] sm:$0xff]
      %v307 = vld [vmem:[%s1 + $0xb0] sm:$0xff]
      %v308 = vld [vmem:[%s1 + $0xb8] sm:$0xff]
      %v309 = vld [vmem:[%s1 + $0xc0] sm:$0xff]
      %v310 = vld [vmem:[%s1 + $0xc8] sm:$0xff]
      %v311 = vld [vmem:[%s1 + $0xd0] sm:$0xff]
      %v312 = vld [vmem:[%s1 + $0xd8] sm:$0xff]
      %v313 = vld [vmem:[%s1 + $0xe0] sm:$0xff]
      %v314 = vld [vmem:[%s1 + $0xe8] sm:$0xff]
      %v315 = vld [vmem:[%s1 + $0xf0] sm:$0xff]
      %v316 = vld [vmem:[%s1 + $0xf8] sm:$0xff]
      %v317 = vld [vmem:[%s1 + $0x100] sm:$0xff]
      %v318 = vld [vmem:[%s1 + $0x108] sm:$0xff]
      %v319 = vld [vmem:[%s1 + $0x110] sm:$0xff]
      %v320 = vld [vmem:[%s1 + $0x118] sm:$0xff]
      %v321 = vld [vmem:[%s1 + $0x120] sm:$0xff]
      %v322 = vld [vmem:[%s1 + $0x128] sm:$0xff]
      %v323 = vld [vmem:[%s1 + $0x130] sm:$0xff]
      %v324 = vld [vmem:[%s1 + $0x138] sm:$0xff]
      %v325 = vld [vmem:[%s1 + $0x140] sm:$0xff]
      %v326 = vld [vmem:[%s1 + $0x148] sm:$0xff]
      %v327 = vld [vmem:[%s1 + $0x150] sm:$0xff]
      %v328 = vld [vmem:[%s1 + $0x158] sm:$0xff]
      %v329 = vld [vmem:[%s1 + $0x160] sm:$0xff]
      %v330 = vld [vmem:[%s1 + $0x168] sm:$0xff]
      %v331 = vld [vmem:[%s1 + $0x170] sm:$0xff]
      %v332 = vld [vmem:[%s1 + $0x178] sm:$0xff]
      %v333 = vld [vmem:[%s1 + $0x180] sm:$0xff]
      %v334 = vld [vmem:[%s1 + $0x188] sm:$0xff]
      %v335 = vld [vmem:[%s1 + $0x190] sm:$0xff]
      %v336 = vld [vmem:[%s1 + $0x198] sm:$0xff]
      %v337 = vld [vmem:[%s1 + $0x1a0] sm:$0xff]
      %v338 = vld [vmem:[%s1 + $0x1a8] sm:$0xff]
      %v339 = vld [vmem:[%s1 + $0x1b0] sm:$0xff]
      %v340 = vld [vmem:[%s1 + $0x1b8] sm:$0xff]
      %v341 = vld [vmem:[%s1 + $0x1c0] sm:$0xff]
      %v342 = vld [vmem:[%s1 + $0x1c8] sm:$0xff]
      %v343 = vld [vmem:[%s1 + $0x1d0] sm:$0xff]
      %v344 = vld [vmem:[%s1 + $0x1d8] sm:$0xff]
      %v345 = vld [vmem:[%s1 + $0x1e0] sm:$0xff]
      %v346 = vld [vmem:[%s1 + $0x1e8] sm:$0xff]
      %v347 = vld [vmem:[%s1 + $0x1f0] sm:$0xff]
      %v348 = vld [vmem:[%s1 + $0x1f8] sm:$0xff]
      %v349 = vld [vmem:[%s2] sm:$0x3]
      %v351 = vperm.slane %v349, 0
      %v352 = vperm.slane %v349, 1
      %v419 = vunpack.c.l.b16 %v285
      %v420 = vunpack.c.h.b16 %v285
      %v421 = vunpack.c.l.b16 %v286
      %v422 = vunpack.c.h.b16 %v286
      %v423 = vunpack.c.l.b16 %v287
      %v424 = vunpack.c.h.b16 %v287
      %v425 = vunpack.c.l.b16 %v288
      %v426 = vunpack.c.h.b16 %v288
      %v427 = vunpack.c.l.b16 %v289
      %v428 = vunpack.c.h.b16 %v289
      %v429 = vunpack.c.l.b16 %v290
      %v430 = vunpack.c.h.b16 %v290
      %v431 = vunpack.c.l.b16 %v291
      %v432 = vunpack.c.h.b16 %v291
      %v433 = vunpack.c.l.b16 %v292
      %v434 = vunpack.c.h.b16 %v292
      %v435 = vunpack.c.l.b16 %v293
      %v436 = vunpack.c.h.b16 %v293
      %v437 = vunpack.c.l.b16 %v294
      %v438 = vunpack.c.h.b16 %v294
      %v439 = vunpack.c.l.b16 %v295
      %v440 = vunpack.c.h.b16 %v295
      %v441 = vunpack.c.l.b16 %v296
      %v442 = vunpack.c.h.b16 %v296
      %v443 = vunpack.c.l.b16 %v297
      %v444 = vunpack.c.h.b16 %v297
      %v445 = vunpack.c.l.b16 %v298
      %v446 = vunpack.c.h.b16 %v298
      %v447 = vunpack.c.l.b16 %v299
      %v448 = vunpack.c.h.b16 %v299
      %v449 = vunpack.c.l.b16 %v300
      %v450 = vunpack.c.h.b16 %v300
      %v451 = vunpack.c.l.b16 %v301
      %v452 = vunpack.c.h.b16 %v301
      %v453 = vunpack.c.l.b16 %v302
      %v454 = vunpack.c.h.b16 %v302
      %v455 = vunpack.c.l.b16 %v303
      %v456 = vunpack.c.h.b16 %v303
      %v457 = vunpack.c.l.b16 %v304
      %v458 = vunpack.c.h.b16 %v304
      %v459 = vunpack.c.l.b16 %v305
      %v460 = vunpack.c.h.b16 %v305
      %v461 = vunpack.c.l.b16 %v306
      %v462 = vunpack.c.h.b16 %v306
      %v463 = vunpack.c.l.b16 %v307
      %v464 = vunpack.c.h.b16 %v307
      %v465 = vunpack.c.l.b16 %v308
      %v466 = vunpack.c.h.b16 %v308
      %v467 = vunpack.c.l.b16 %v309
      %v468 = vunpack.c.h.b16 %v309
      %v469 = vunpack.c.l.b16 %v310
      %v470 = vunpack.c.h.b16 %v310
      %v471 = vunpack.c.l.b16 %v311
      %v472 = vunpack.c.h.b16 %v311
      %v473 = vunpack.c.l.b16 %v312
      %v474 = vunpack.c.h.b16 %v312
      %v475 = vunpack.c.l.b16 %v313
      %v476 = vunpack.c.h.b16 %v313
      %v477 = vunpack.c.l.b16 %v314
      %v478 = vunpack.c.h.b16 %v314
      %v479 = vunpack.c.l.b16 %v315
      %v480 = vunpack.c.h.b16 %v315
      %v481 = vunpack.c.l.b16 %v316
      %v482 = vunpack.c.h.b16 %v316
      %v483 = vunpack.c.l.b16 %v317
      %v484 = vunpack.c.h.b16 %v317
      %v485 = vunpack.c.l.b16 %v318
      %v486 = vunpack.c.h.b16 %v318
      %v487 = vunpack.c.l.b16 %v319
      %v488 = vunpack.c.h.b16 %v319
      %v489 = vunpack.c.l.b16 %v320
      %v490 = vunpack.c.h.b16 %v320
      %v491 = vunpack.c.l.b16 %v321
      %v492 = vunpack.c.h.b16 %v321
      %v493 = vunpack.c.l.b16 %v322
      %v494 = vunpack.c.h.b16 %v322
      %v495 = vunpack.c.l.b16 %v323
      %v496 = vunpack.c.h.b16 %v323
      %v497 = vunpack.c.l.b16 %v324
      %v498 = vunpack.c.h.b16 %v324
      %v499 = vunpack.c.l.b16 %v325
      %v500 = vunpack.c.h.b16 %v325
      %v501 = vunpack.c.l.b16 %v326
      %v502 = vunpack.c.h.b16 %v326
      %v503 = vunpack.c.l.b16 %v327
      %v504 = vunpack.c.h.b16 %v327
      %v505 = vunpack.c.l.b16 %v328
      %v506 = vunpack.c.h.b16 %v328
      %v507 = vunpack.c.l.b16 %v329
      %v508 = vunpack.c.h.b16 %v329
      %v509 = vunpack.c.l.b16 %v330
      %v510 = vunpack.c.h.b16 %v330
      %v511 = vunpack.c.l.b16 %v331
      %v512 = vunpack.c.h.b16 %v331
      %v513 = vunpack.c.l.b16 %v332
      %v514 = vunpack.c.h.b16 %v332
      %v515 = vunpack.c.l.b16 %v333
      %v516 = vunpack.c.h.b16 %v333
      %v517 = vunpack.c.l.b16 %v334
      %v518 = vunpack.c.h.b16 %v334
      %v519 = vunpack.c.l.b16 %v335
      %v520 = vunpack.c.h.b16 %v335
      %v521 = vunpack.c.l.b16 %v336
      %v522 = vunpack.c.h.b16 %v336
      %v523 = vunpack.c.l.b16 %v337
      %v524 = vunpack.c.h.b16 %v337
      %v525 = vunpack.c.l.b16 %v338
      %v526 = vunpack.c.h.b16 %v338
      %v527 = vunpack.c.l.b16 %v339
      %v528 = vunpack.c.h.b16 %v339
      %v529 = vunpack.c.l.b16 %v340
      %v530 = vunpack.c.h.b16 %v340
      %v531 = vunpack.c.l.b16 %v341
      %v532 = vunpack.c.h.b16 %v341
      %v533 = vunpack.c.l.b16 %v342
      %v534 = vunpack.c.h.b16 %v342
      %v535 = vunpack.c.l.b16 %v343
      %v536 = vunpack.c.h.b16 %v343
      %v537 = vunpack.c.l.b16 %v344
      %v538 = vunpack.c.h.b16 %v344
      %v539 = vunpack.c.l.b16 %v345
      %v540 = vunpack.c.h.b16 %v345
      %v541 = vunpack.c.l.b16 %v346
      %v542 = vunpack.c.h.b16 %v346
      %v543 = vunpack.c.l.b16 %v347
      %v544 = vunpack.c.h.b16 %v347
      %v545 = vunpack.c.l.b16 %v348
      %v546 = vunpack.c.h.b16 %v348
      %v547 = vpack.c.b16 %v421, %v419
      %v548 = vpack.c.b16 %v422, %v420
      %v549 = vpack.c.b16 %v425, %v423
      %v550 = vpack.c.b16 %v426, %v424
      %v551 = vpack.c.b16 %v429, %v427
      %v552 = vpack.c.b16 %v430, %v428
      %v553 = vpack.c.b16 %v433, %v431
      %v554 = vpack.c.b16 %v434, %v432
      %v555 = vpack.c.b16 %v437, %v435
      %v556 = vpack.c.b16 %v438, %v436
      %v557 = vpack.c.b16 %v441, %v439
      %v558 = vpack.c.b16 %v442, %v440
      %v559 = vpack.c.b16 %v445, %v443
      %v560 = vpack.c.b16 %v446, %v444
      %v561 = vpack.c.b16 %v449, %v447
      %v562 = vpack.c.b16 %v450, %v448
      %v563 = vpack.c.b16 %v453, %v451
      %v564 = vpack.c.b16 %v454, %v452
      %v565 = vpack.c.b16 %v457, %v455
      %v566 = vpack.c.b16 %v458, %v456
      %v567 = vpack.c.b16 %v461, %v459
      %v568 = vpack.c.b16 %v462, %v460
      %v569 = vpack.c.b16 %v465, %v463
      %v570 = vpack.c.b16 %v466, %v464
      %v571 = vpack.c.b16 %v469, %v467
      %v572 = vpack.c.b16 %v470, %v468
      %v573 = vpack.c.b16 %v473, %v471
      %v574 = vpack.c.b16 %v474, %v472
      %v575 = vpack.c.b16 %v477, %v475
      %v576 = vpack.c.b16 %v478, %v476
      %v577 = vpack.c.b16 %v481, %v479
      %v578 = vpack.c.b16 %v482, %v480
      %v579 = vpack.c.b16 %v485, %v483
      %v580 = vpack.c.b16 %v486, %v484
      %v581 = vpack.c.b16 %v489, %v487
      %v582 = vpack.c.b16 %v490, %v488
      %v583 = vpack.c.b16 %v493, %v491
      %v584 = vpack.c.b16 %v494, %v492
      %v585 = vpack.c.b16 %v497, %v495
      %v586 = vpack.c.b16 %v498, %v496
      %v587 = vpack.c.b16 %v501, %v499
      %v588 = vpack.c.b16 %v502, %v500
      %v589 = vpack.c.b16 %v505, %v503
      %v590 = vpack.c.b16 %v506, %v504
      %v591 = vpack.c.b16 %v509, %v507
      %v592 = vpack.c.b16 %v510, %v508
      %v593 = vpack.c.b16 %v513, %v511
      %v594 = vpack.c.b16 %v514, %v512
      %v595 = vpack.c.b16 %v517, %v515
      %v596 = vpack.c.b16 %v518, %v516
      %v597 = vpack.c.b16 %v521, %v519
      %v598 = vpack.c.b16 %v522, %v520
      %v599 = vpack.c.b16 %v525, %v523
      %v600 = vpack.c.b16 %v526, %v524
      %v601 = vpack.c.b16 %v529, %v527
      %v602 = vpack.c.b16 %v530, %v528
      %v603 = vpack.c.b16 %v533, %v531
      %v604 = vpack.c.b16 %v534, %v532
      %v605 = vpack.c.b16 %v537, %v535
      %v606 = vpack.c.b16 %v538, %v536
      %v607 = vpack.c.b16 %v541, %v539
      %v608 = vpack.c.b16 %v542, %v540
      %v609 = vpack.c.b16 %v545, %v543
      %v610 = vpack.c.b16 %v546, %v544
      %675 = vmatpush.bf16.msra.mxu0 %v561
      %676 = vmatpush.bf16.msra.mxu0 %v559
      %677 = vmatpush.bf16.msra.mxu0 %v557
      %678 = vmatpush.bf16.msra.mxu0 %v555
      %679 = vmatpush.bf16.msra.mxu0 %v553
      %680 = vmatpush.bf16.msra.mxu0 %v551
      %681 = vmatpush.bf16.msra.mxu0 %v549
      %682 = vmatpush.bf16.msra.mxu0 %v547
      %683 = vmatmul.bf16.gmra.mxu0 %v281
      %v684 = vpop.f32.mrf.mxu0
      %v685 = vadd.f32 %v351, %v684
      %v686 = vpop.f32.mrf.mxu0
      %687 = vdwg.mxu0
      %688 = vmatpush.bf16.msra.mxu0 %v577
      %689 = vmatpush.bf16.msra.mxu0 %v575
      %690 = vmatpush.bf16.msra.mxu0 %v573
      %691 = vmatpush.bf16.msra.mxu0 %v571
      %692 = vmatpush.bf16.msra.mxu0 %v569
      %693 = vmatpush.bf16.msra.mxu0 %v567
      %694 = vmatpush.bf16.msra.mxu0 %v565
      %695 = vmatpush.bf16.msra.mxu0 %v563
      %696 = vmatmul.bf16.gmra.mxu0 %v282
      %v697 = vpop.f32.mrf.mxu0
      %v698 = vadd.f32 %v685, %v697
      %v699 = vpop.f32.mrf.mxu0
      %700 = vdwg.mxu0
      %701 = vmatpush.bf16.msra.mxu0 %v593
      %702 = vmatpush.bf16.msra.mxu0 %v591
      %703 = vmatpush.bf16.msra.mxu0 %v589
      %704 = vmatpush.bf16.msra.mxu0 %v587
      %705 = vmatpush.bf16.msra.mxu0 %v585
      %706 = vmatpush.bf16.msra.mxu0 %v583
      %707 = vmatpush.bf16.msra.mxu0 %v581
      %708 = vmatpush.bf16.msra.mxu0 %v579
      %709 = vmatmul.bf16.gmra.mxu0 %v283
      %v710 = vpop.f32.mrf.mxu0
      %v711 = vadd.f32 %v698, %v710
      %v712 = vpop.f32.mrf.mxu0
      %713 = vdwg.mxu0
      %714 = vmatpush.bf16.msra.mxu0 %v609
      %715 = vmatpush.bf16.msra.mxu0 %v607
      %716 = vmatpush.bf16.msra.mxu0 %v605
      %717 = vmatpush.bf16.msra.mxu0 %v603
      %718 = vmatpush.bf16.msra.mxu0 %v601
      %719 = vmatpush.bf16.msra.mxu0 %v599
      %720 = vmatpush.bf16.msra.mxu0 %v597
      %721 = vmatpush.bf16.msra.mxu0 %v595
      %722 = vmatmul.bf16.gmra.mxu0 %v284
      %v723 = vpop.f32.mrf.mxu0
      %v724 = vadd.f32 %v711, %v723
      %v725 = vpop.f32.mrf.mxu0
      %726 = vdwg.mxu0
      %727 = vmatpush.bf16.msra.mxu0 %v562
      %728 = vmatpush.bf16.msra.mxu0 %v560
      %729 = vmatpush.bf16.msra.mxu0 %v558
      %730 = vmatpush.bf16.msra.mxu0 %v556
      %731 = vmatpush.bf16.msra.mxu0 %v554
      %732 = vmatpush.bf16.msra.mxu0 %v552
      %733 = vmatpush.bf16.msra.mxu0 %v550
      %734 = vmatpush.bf16.msra.mxu0 %v548
      %735 = vmatmul.bf16.gmra.mxu0 %v281
      %v736 = vpop.f32.mrf.mxu0
      %v737 = vadd.f32 %v352, %v736
      %v738 = vpop.f32.mrf.mxu0
      %739 = vdwg.mxu0
      %740 = vmatpush.bf16.msra.mxu0 %v578
      %741 = vmatpush.bf16.msra.mxu0 %v576
      %742 = vmatpush.bf16.msra.mxu0 %v574
      %743 = vmatpush.bf16.msra.mxu0 %v572
      %744 = vmatpush.bf16.msra.mxu0 %v570
      %745 = vmatpush.bf16.msra.mxu0 %v568
      %746 = vmatpush.bf16.msra.mxu0 %v566
      %747 = vmatpush.bf16.msra.mxu0 %v564
      %748 = vmatmul.bf16.gmra.mxu0 %v282
      %v749 = vpop.f32.mrf.mxu0
      %v750 = vadd.f32 %v737, %v749
      %v751 = vpop.f32.mrf.mxu0
      %752 = vdwg.mxu0
      %753 = vmatpush.bf16.msra.mxu0 %v594
      %754 = vmatpush.bf16.msra.mxu0 %v592
      %755 = vmatpush.bf16.msra.mxu0 %v590
      %756 = vmatpush.bf16.msra.mxu0 %v588
      %757 = vmatpush.bf16.msra.mxu0 %v586
      %758 = vmatpush.bf16.msra.mxu0 %v584
      %759 = vmatpush.bf16.msra.mxu0 %v582
      %760 = vmatpush.bf16.msra.mxu0 %v580
      %761 = vmatmul.bf16.gmra.mxu0 %v283
      %v762 = vpop.f32.mrf.mxu0
      %v763 = vadd.f32 %v750, %v762
      %v764 = vpop.f32.mrf.mxu0
      %765 = vdwg.mxu0
      %766 = vmatpush.bf16.msra.mxu0 %v610
      %767 = vmatpush.bf16.msra.mxu0 %v608
      %768 = vmatpush.bf16.msra.mxu0 %v606
      %769 = vmatpush.bf16.msra.mxu0 %v604
      %770 = vmatpush.bf16.msra.mxu0 %v602
      %771 = vmatpush.bf16.msra.mxu0 %v600
      %772 = vmatpush.bf16.msra.mxu0 %v598
      %773 = vmatpush.bf16.msra.mxu0 %v596
      %774 = vmatmul.bf16.gmra.mxu0 %v284
      %v775 = vpop.f32.mrf.mxu0
      %v776 = vadd.f32 %v763, %v775
      %v777 = vpop.f32.mrf.mxu0
      %778 = vdwg.mxu0
      %v779 = vmax.f32 %v724, 0.0
      %v780 = vmax.f32 %v776, 0.0
      %v781 = vpack.c.bf16 %v779, %v779
      %v782 = vpack.c.bf16 %v780, %v780
      %v783 = vld [vmem:[%s3] sm:$0xf]
      %v784 = vld [vmem:[%s3 + $0x4] sm:$0xf]
      %v785 = vld [vmem:[%s3 + $0x8] sm:$0xf]
      %v786 = vld [vmem:[%s3 + $0xc] sm:$0xf]
      %v787 = vld [vmem:[%s3 + $0x10] sm:$0xf]
      %v788 = vld [vmem:[%s3 + $0x14] sm:$0xf]
      %v789 = vld [vmem:[%s3 + $0x18] sm:$0xf]
      %v790 = vld [vmem:[%s3 + $0x1c] sm:$0xf]
      %v791 = vld [vmem:[%s3 + $0x20] sm:$0xf]
      %v792 = vld [vmem:[%s3 + $0x24] sm:$0xf]
      %v793 = vld [vmem:[%s3 + $0x28] sm:$0xf]
      %v794 = vld [vmem:[%s3 + $0x2c] sm:$0xf]
      %v795 = vld [vmem:[%s3 + $0x30] sm:$0xf]
      %v796 = vld [vmem:[%s3 + $0x34] sm:$0xf]
      %v797 = vld [vmem:[%s3 + $0x38] sm:$0xf]
      %v798 = vld [vmem:[%s3 + $0x3c] sm:$0xf]
      %v799 = vld [vmem:[%s3 + $0x40] sm:$0xf]
      %v800 = vld [vmem:[%s3 + $0x44] sm:$0xf]
      %v801 = vld [vmem:[%s3 + $0x48] sm:$0xf]
      %v802 = vld [vmem:[%s3 + $0x4c] sm:$0xf]
      %v803 = vld [vmem:[%s3 + $0x50] sm:$0xf]
      %v804 = vld [vmem:[%s3 + $0x54] sm:$0xf]
      %v805 = vld [vmem:[%s3 + $0x58] sm:$0xf]
      %v806 = vld [vmem:[%s3 + $0x5c] sm:$0xf]
      %v807 = vld [vmem:[%s3 + $0x60] sm:$0xf]
      %v808 = vld [vmem:[%s3 + $0x64] sm:$0xf]
      %v809 = vld [vmem:[%s3 + $0x68] sm:$0xf]
      %v810 = vld [vmem:[%s3 + $0x6c] sm:$0xf]
      %v811 = vld [vmem:[%s3 + $0x70] sm:$0xf]
      %v812 = vld [vmem:[%s3 + $0x74] sm:$0xf]
      %v813 = vld [vmem:[%s3 + $0x78] sm:$0xf]
      %v814 = vld [vmem:[%s3 + $0x7c] sm:$0xf]
      %v815 = vld [vmem:[%s4] sm:$0x1]
      %v817 = vperm.slane %v815, 0
      %v851 = vunpack.c.l.b16 %v783
      %v852 = vunpack.c.l.b16 %v784
      %v853 = vunpack.c.l.b16 %v785
      %v854 = vunpack.c.l.b16 %v786
      %v855 = vunpack.c.l.b16 %v787
      %v856 = vunpack.c.l.b16 %v788
      %v857 = vunpack.c.l.b16 %v789
      %v858 = vunpack.c.l.b16 %v790
      %v859 = vunpack.c.l.b16 %v791
      %v860 = vunpack.c.l.b16 %v792
      %v861 = vunpack.c.l.b16 %v793
      %v862 = vunpack.c.l.b16 %v794
      %v863 = vunpack.c.l.b16 %v795
      %v864 = vunpack.c.l.b16 %v796
      %v865 = vunpack.c.l.b16 %v797
      %v866 = vunpack.c.l.b16 %v798
      %v867 = vunpack.c.l.b16 %v799
      %v868 = vunpack.c.l.b16 %v800
      %v869 = vunpack.c.l.b16 %v801
      %v870 = vunpack.c.l.b16 %v802
      %v871 = vunpack.c.l.b16 %v803
      %v872 = vunpack.c.l.b16 %v804
      %v873 = vunpack.c.l.b16 %v805
      %v874 = vunpack.c.l.b16 %v806
      %v875 = vunpack.c.l.b16 %v807
      %v876 = vunpack.c.l.b16 %v808
      %v877 = vunpack.c.l.b16 %v809
      %v878 = vunpack.c.l.b16 %v810
      %v879 = vunpack.c.l.b16 %v811
      %v880 = vunpack.c.l.b16 %v812
      %v881 = vunpack.c.l.b16 %v813
      %v882 = vunpack.c.l.b16 %v814
      %v883 = vpack.c.b16 %v852, %v851
      %v884 = vpack.c.b16 %v854, %v853
      %v885 = vpack.c.b16 %v856, %v855
      %v886 = vpack.c.b16 %v858, %v857
      %v887 = vpack.c.b16 %v860, %v859
      %v888 = vpack.c.b16 %v862, %v861
      %v889 = vpack.c.b16 %v864, %v863
      %v890 = vpack.c.b16 %v866, %v865
      %v891 = vpack.c.b16 %v868, %v867
      %v892 = vpack.c.b16 %v870, %v869
      %v893 = vpack.c.b16 %v872, %v871
      %v894 = vpack.c.b16 %v874, %v873
      %v895 = vpack.c.b16 %v876, %v875
      %v896 = vpack.c.b16 %v878, %v877
      %v897 = vpack.c.b16 %v880, %v879
      %v898 = vpack.c.b16 %v882, %v881
      %915 = vmatpush.bf16.msra.mxu0 %v890
      %916 = vmatpush.bf16.msra.mxu0 %v889
      %917 = vmatpush.bf16.msra.mxu0 %v888
      %918 = vmatpush.bf16.msra.mxu0 %v887
      %919 = vmatpush.bf16.msra.mxu0 %v886
      %920 = vmatpush.bf16.msra.mxu0 %v885
      %921 = vmatpush.bf16.msra.mxu0 %v884
      %922 = vmatpush.bf16.msra.mxu0 %v883
      %923 = vmatmul.bf16.gmra.mxu0 %v781
      %v924 = vpop.f32.mrf.mxu0
      %v925 = vadd.f32 %v817, %v924
      %v926 = vpop.f32.mrf.mxu0
      %927 = vdwg.mxu0
      %928 = vmatpush.bf16.msra.mxu0 %v898
      %929 = vmatpush.bf16.msra.mxu0 %v897
      %930 = vmatpush.bf16.msra.mxu0 %v896
      %931 = vmatpush.bf16.msra.mxu0 %v895
      %932 = vmatpush.bf16.msra.mxu0 %v894
      %933 = vmatpush.bf16.msra.mxu0 %v893
      %934 = vmatpush.bf16.msra.mxu0 %v892
      %935 = vmatpush.bf16.msra.mxu0 %v891
      %936 = vmatmul.bf16.gmra.mxu0 %v782
      %v937 = vpop.f32.mrf.mxu0
      %v938 = vadd.f32 %v925, %v937
      %v939 = vpop.f32.mrf.mxu0
      %940 = vdwg.mxu0
      %v941 = vmax.f32 %v938, 0.0
      %v942 = vpack.c.bf16 %v941, %v941
      %v943 = vld [vmem:[%s5] sm:$0xf]
      %v944 = vld [vmem:[%s5 + $0x4] sm:$0xf]
      %v945 = vld [vmem:[%s5 + $0x8] sm:$0xf]
      %v946 = vld [vmem:[%s5 + $0xc] sm:$0xf]
      %v947 = vld [vmem:[%s5 + $0x10] sm:$0xf]
      %v948 = vld [vmem:[%s5 + $0x14] sm:$0xf]
      %v949 = vld [vmem:[%s5 + $0x18] sm:$0xf]
      %v950 = vld [vmem:[%s5 + $0x1c] sm:$0xf]
      %v951 = vld [vmem:[%s5 + $0x20] sm:$0xf]
      %v952 = vld [vmem:[%s5 + $0x24] sm:$0xf]
      %v953 = vld [vmem:[%s5 + $0x28] sm:$0xf]
      %v954 = vld [vmem:[%s5 + $0x2c] sm:$0xf]
      %v955 = vld [vmem:[%s5 + $0x30] sm:$0xf]
      %v956 = vld [vmem:[%s5 + $0x34] sm:$0xf]
      %v957 = vld [vmem:[%s5 + $0x38] sm:$0xf]
      %v958 = vld [vmem:[%s5 + $0x3c] sm:$0xf]
      %v959 = vld [vmem:[%s6] sm:$0x1]
      %v961 = vperm.slane %v959, 0
      %v979 = vunpack.c.l.b16 %v943
      %v980 = vunpack.c.l.b16 %v944
      %v981 = vunpack.c.l.b16 %v945
      %v982 = vunpack.c.l.b16 %v946
      %v983 = vunpack.c.l.b16 %v947
      %v984 = vunpack.c.l.b16 %v948
      %v985 = vunpack.c.l.b16 %v949
      %v986 = vunpack.c.l.b16 %v950
      %v987 = vunpack.c.l.b16 %v951
      %v988 = vunpack.c.l.b16 %v952
      %v989 = vunpack.c.l.b16 %v953
      %v990 = vunpack.c.l.b16 %v954
      %v991 = vunpack.c.l.b16 %v955
      %v992 = vunpack.c.l.b16 %v956
      %v993 = vunpack.c.l.b16 %v957
      %v994 = vunpack.c.l.b16 %v958
      %v995 = vpack.c.b16 %v980, %v979
      %v996 = vpack.c.b16 %v982, %v981
      %v997 = vpack.c.b16 %v984, %v983
      %v998 = vpack.c.b16 %v986, %v985
      %v999 = vpack.c.b16 %v988, %v987
      %v1000 = vpack.c.b16 %v990, %v989
      %v1001 = vpack.c.b16 %v992, %v991
      %v1002 = vpack.c.b16 %v994, %v993
      %1011 = vmatpush.bf16.msra.mxu0 %v1002
      %1012 = vmatpush.bf16.msra.mxu0 %v1001
      %1013 = vmatpush.bf16.msra.mxu0 %v1000
      %1014 = vmatpush.bf16.msra.mxu0 %v999
      %1015 = vmatpush.bf16.msra.mxu0 %v998
      %1016 = vmatpush.bf16.msra.mxu0 %v997
      %1017 = vmatpush.bf16.msra.mxu0 %v996
      %1018 = vmatpush.bf16.msra.mxu0 %v995
      %1019 = vmatmul.bf16.gmra.mxu0 %v942
      %v1020 = vpop.f32.mrf.mxu0
      %v1021 = vadd.f32 %v961, %v1020
      %v1022 = vpop.f32.mrf.mxu0
      %1023 = vdwg.mxu0
      %v1024 = vpack.c.bf16 %v1021, %v1021
      %1025 = vst [vmem:[%s276] sm:$0xf] %v1024
      %p1026 = scmp.lt.s32.totalorder %s18, 1
      %s1027 = scalar_select %p1026, %s18, 1
      %s1028 = smul.addr %s1027, 4
      %s1029 = scalar_lea.vmem %s7, %s1028
      // Predicated region
      $region49: #{_forward.1} parent=47 // pred_check
        %p1030 = pneg %p188
      $region50: #{_forward.1} parent=47 // pred_check_branch
        %1032 = sbr.rel (%p1030) target = $region52
      $region51: #{_forward.1} parent=47 // pred_region
        _
      $region52: #{_forward.1} parent=47 // pred_fallthru
        _
    $region48: #{_forward.1} parent=5 // pred_fallthru
      _
    %p1033 = scmp.le.s32.totalorder 2, %s13
    // Predicated region
    $region53: #{_forward.1} parent=5 // pred_check
      %p1034 = pneg %p1033
    $region54: #{_forward.1} parent=5 // pred_check_branch
      %1036 = sbr.rel (%p1034) target = $region56
    $region55: #{_forward.1} parent=5 // pred_region
      %s1037 = ssub.s32 %s13, 2
      // Predicated region
      $region57: #{_forward.1} parent=55 // pred_check
        %p1038 = pneg %p194
      $region58: #{_forward.1} parent=55 // pred_check_branch
        %1040 = sbr.rel (%p1038) target = $region60
      $region59: #{_forward.1} parent=55 // pred_region
        %p1041 = scmp.lt.s32.totalorder %s19, 1
        %s1042 = scalar_select %p1041, %s19, 1
        %s1043 = smul.addr %s1042, 4
        %s1044 = scalar_lea.vmem %s7, %s1043
      $region60: #{_forward.1} parent=55 // pred_fallthru
        _
    $region56: #{_forward.1} parent=5 // pred_fallthru
      _
  $region6: #{_forward.1} parent=0 // loop_footer
    %s17 = sadd.s32 1, %s13
  $region7: #{_forward.1} parent=0 // loop_footer_branch
    %12 = sbr.rel target = $region3
  $region8: #{_forward.1} parent=0 // loop_exit
    _

</llo_original>
